<compile_context>
chip_gen: v7x
topology: tpu7x:2x2x1
jax: 0.10.0
libtpu: 0.0.40
codegen_flags: <defaults>
</compile_context>

<pallas_src>
import functools

import jax
import jax.numpy as jnp
from jax.experimental import pallas as pl
from jax.experimental.pallas import tpu as pltpu


def _round_up(a, b):
    return ((a + b - 1) // b) * b


# ----------------------------------------------------------------------------
# Generation-aware configuration
# ----------------------------------------------------------------------------
def _probe_single_buffering():
    """One-time probe: does this jax/Mosaic accept pipeline_mode=pl.Buffered(1)?"""
    def k(x_ref, o_ref):
        o_ref[...] = x_ref[...]

    try:
        x = jnp.zeros((8, 128), jnp.float32)
        fn = pl.pallas_call(
            k,
            out_shape=jax.ShapeDtypeStruct((8, 128), jnp.float32),
            grid=(1,),
            in_specs=[pl.BlockSpec((8, 128), lambda i: (0, 0),
                                   pipeline_mode=pl.Buffered(1))],
            out_specs=pl.BlockSpec((8, 128), lambda i: (0, 0)),
        )
        jax.block_until_ready(fn(x))
        return True
    except Exception:
        return False


@functools.lru_cache(maxsize=None)
def _tpu_config():
    kind = ""
    try:
        kind = jax.devices()[0].device_kind.lower()
    except Exception:
        pass
    vmem_cap = None
    try:
        vmem_cap = int(getattr(pltpu.get_tpu_info(), "vmem_capacity_bytes"))
    except Exception:
        vmem_cap = None
    if vmem_cap is None:
        vmem_cap = 64 * 2**20 if "v7" in kind else 128 * 2**20

    is_v7x = ("v7" in kind) or vmem_cap <= 64 * 2**20
    is_v5e = ("v5 lite" in kind) or ("v5lite" in kind) or ("v5e" in kind)

    if is_v7x:
        vmem_limit = 38 * 2**20          # headroom on 64 MiB/TC VMEM
        tm_ftiled = 256
    else:
        vmem_limit = 88 * 2**20          # 128 MiB physical VMEM on v5e/v6e
        tm_ftiled = 512                  # bigger row tile halves weight re-streaming traffic
    wbuf_depth = 3 if is_v5e else 2      # deeper weight-slice pipelining on low-BW v5e only

    return {
        "vmem_limit": int(vmem_limit),
        "tm_ftiled": int(tm_ftiled),
        "wbuf_depth": int(wbuf_depth),
        "two_tc": bool(is_v7x),          # v7x: 2 TensorCores per chip
        "pm_ok": _probe_single_buffering(),
    }


def _block_spec(shape, index_map, buffers=0):
    """BlockSpec with an optional multi-buffering depth (gracefully degrades)."""
    if not buffers:
        return pl.BlockSpec(shape, index_map)
    try:
        return pl.BlockSpec(shape, index_map, pipeline_mode=pl.Buffered(buffers))
    except TypeError:
        return pl.BlockSpec(shape, index_map)


# ----------------------------------------------------------------------------
# Kernels
# ----------------------------------------------------------------------------
def ffn_kernel_resident(x_ref, w1_ref, b1_ref, w2_ref, b2_ref, o_ref):
    """Both weight matrices resident in VMEM; grid only over row tiles."""
    h = jnp.dot(x_ref[...], w1_ref[...], preferred_element_type=jnp.float32)
    h = jnp.maximum(h + b1_ref[...], 0.0)                 # bias add + ReLU in f32
    h = h.astype(w2_ref.dtype)                            # back to param dtype for 2nd MXU pass
    o = jnp.dot(h, w2_ref[...], preferred_element_type=jnp.float32) + b2_ref[...]
    o_ref[...] = o.astype(o_ref.dtype)


def ffn_kernel_ftiled(x_ref, w1_ref, b1_ref, w2_ref, b2_ref, o_ref, acc_ref):
    """Hidden (FFN) dim tiled; f32 accumulator scratch; b2 added once in the finalize step."""
    f = pl.program_id(1)

    @pl.when(f == 0)
    def _():
        acc_ref[...] = jnp.zeros_like(acc_ref)

    h = jnp.dot(x_ref[...], w1_ref[...], preferred_element_type=jnp.float32)
    h = jnp.maximum(h + b1_ref[...], 0.0).astype(w2_ref.dtype)
    acc_ref[...] += jnp.dot(h, w2_ref[...], preferred_element_type=jnp.float32)

    @pl.when(f == pl.num_programs(1) - 1)
    def _():
        o_ref[...] = (acc_ref[...] + b2_ref[...]).astype(o_ref.dtype)


# ----------------------------------------------------------------------------
# Row-tile selection (static, runs at trace time on shapes)
# ----------------------------------------------------------------------------
def _pick_tm(M, tm_target, two_tc, min_tile=16):
    tm_target = max(min_tile, (tm_target // min_tile) * min_tile)
    if M <= tm_target:
        if two_tc and M >= 2 * min_tile:
            # ensure >= 2 row tiles so the "parallel" axis spans both TensorCores (v7x)
            return _round_up((M + 1) // 2, min_tile)
        return _round_up(M, min_tile)
    # Prefer a divisor of M (multiple of min_tile) so the M pad / output slice can be skipped.
    for t in range(tm_target, min_tile - 1, -min_tile):
        if M % t == 0 and 2 * t >= tm_target:
            return t
    return tm_target


# ----------------------------------------------------------------------------
# Jitted core
# ----------------------------------------------------------------------------
@functools.partial(
    jax.jit,
    static_argnames=("use_f_tiling", "tf", "tm_target", "vmem_limit",
                     "wbuf_depth", "two_tc", "pm_ok"),
)
def _ffn_call(x, w1p, b1p, w2p, b2p, *, use_f_tiling, tf, tm_target,
              vmem_limit, wbuf_depth, two_tc, pm_ok):
    B, S, D = x.shape
    Dp, Fp = w1p.shape
    M = B * S
    dtype = x.dtype
    itemsize = jnp.dtype(dtype).itemsize

    tm = _pick_tm(M, tm_target, two_tc)
    Mp = _round_up(M, tm)

    x2 = x.reshape(M, D)
    padded = (Mp != M) or (Dp != D)
    if padded:
        x2 = jnp.pad(x2, ((0, Mp - M), (0, Dp - D)))

    res_b = 1 if pm_ok else 0                 # single-buffer resident (constant-index) operands
    wb = wbuf_depth if pm_ok else 0           # streamed weight-slice buffer depth

    flops = 4 * Mp * Dp * Fp
    if not use_f_tiling:
        bytes_accessed = (2 * Mp * Dp + 2 * Dp * Fp + Fp + Dp) * itemsize
    else:
        n_row_tiles = Mp // tm                # weights re-streamed once per row tile
        bytes_accessed = (2 * Mp * Dp + n_row_tiles * (2 * Dp * Fp + Fp) + Dp) * itemsize
    cost = pl.CostEstimate(flops=int(flops), transcendentals=0,
                           bytes_accessed=int(bytes_accessed))

    if not use_f_tiling:
        out = pl.pallas_call(
            ffn_kernel_resident,
            out_shape=jax.ShapeDtypeStruct((Mp, Dp), dtype),
            grid_spec=pltpu.PrefetchScalarGridSpec(
                num_scalar_prefetch=0,
                grid=(Mp // tm,),
                in_specs=[
                    _block_spec((tm, Dp), lambda i: (i, 0)),            # x row tile
                    _block_spec((Dp, Fp), lambda i: (0, 0), res_b),     # W1^T (resident, 1-buf)
                    _block_spec((1, Fp), lambda i: (0, 0), res_b),      # b1
                    _block_spec((Fp, Dp), lambda i: (0, 0), res_b),     # W2^T (resident, 1-buf)
                    _block_spec((1, Dp), lambda i: (0, 0), res_b),      # b2
                ],
                out_specs=pl.BlockSpec((tm, Dp), lambda i: (i, 0)),
            ),
            compiler_params=pltpu.CompilerParams(
                dimension_semantics=("parallel",),
                vmem_limit_bytes=vmem_limit,
            ),
            cost_estimate=cost,
        )(x2, w1p, b1p, w2p, b2p)
    else:
        out = pl.pallas_call(
            ffn_kernel_ftiled,
            out_shape=jax.ShapeDtypeStruct((Mp, Dp), dtype),
            grid_spec=pltpu.PrefetchScalarGridSpec(
                num_scalar_prefetch=0,
                grid=(Mp // tm, Fp // tf),
                in_specs=[
                    _block_spec((tm, Dp), lambda i, f: (i, 0)),         # x row tile (resident over f)
                    _block_spec((Dp, tf), lambda i, f: (0, f), wb),     # W1^T hidden slice (streamed)
                    _block_spec((1, tf), lambda i, f: (0, f)),          # b1 slice
                    _block_spec((tf, Dp), lambda i, f: (f, 0), wb),     # W2^T hidden slice (streamed)
                    _block_spec((1, Dp), lambda i, f: (0, 0), res_b),   # b2 (finalize only)
                ],
                out_specs=pl.BlockSpec((tm, Dp), lambda i, f: (i, 0)),
                scratch_shapes=[pltpu.VMEM((tm, Dp), jnp.float32)],
            ),
            compiler_params=pltpu.CompilerParams(
                dimension_semantics=("parallel", "arbitrary"),
                vmem_limit_bytes=vmem_limit,
            ),
            cost_estimate=cost,
        )(x2, w1p, b1p, w2p, b2p)

    if padded:
        out = out[:M, :D]
    return out.reshape(B, S, D)


# ----------------------------------------------------------------------------
# Public API: build an FFN forward closure (weights padded/prepacked ONCE)
# ----------------------------------------------------------------------------
def make_ffn(w1, b1, w2, b2, *, force_f_tiled=False, tf=None):
    """w1: (dim, FFNdim) (= FFN1.weight.T), b1: (FFNdim,),
    w2: (FFNdim, dim) (= FFN2.weight.T), b2: (dim,). Returns forward(x)."""
    cfg = _tpu_config()
    D, F = w1.shape
    itemsize = jnp.dtype(w1.dtype).itemsize

    Dp = _round_up(D, 128)                     # lane-dense feature dims
    Fp = _round_up(F, 128)

    # Residency decision: single-buffered weights + double-buffered x/out row tiles must fit
    # the generation-aware VMEM budget with headroom.
    budget = int(cfg["vmem_limit"] * 0.85) - (2 << 20)
    weight_bytes = 2 * Dp * Fp * itemsize      # W1 + W2, single-buffered
    tm_res = 256
    tile_bytes = 4 * tm_res * Dp * itemsize    # x + out tiles, double-buffered
    use_f_tiling = bool(force_f_tiled) or (weight_bytes + tile_bytes > budget)

    if use_f_tiling:
        tm_target = cfg["tm_ftiled"]
        if tf is None:
            # size tf from the VMEM left after the x/out/accumulator row tiles
            fixed = 4 * tm_target * Dp * itemsize + 4 * tm_target * Dp + (2 << 20)
            avail = max(budget - fixed, 0)
            per_tf = cfg["wbuf_depth"] * 2 * Dp * itemsize   # buffered W1 + W2 hidden slices
            tf = max(128, min(512, (avail // max(per_tf, 1)) // 128 * 128, Fp))
        tf = max(128, min((int(tf) // 128) * 128, Fp))
        while Fp % tf != 0:                    # tf must divide the (128-padded) hidden dim
            tf -= 128
    else:
        tm_target = tm_res
        tf = Fp

    # Pad weights/biases once (zero padding is numerically exact for this FFN);
    # skipped entirely when the dims are already 128-aligned.
    w1p = w1 if (Dp == D and Fp == F) else jnp.pad(w1, ((0, Dp - D), (0, Fp - F)))
    b1p = (b1 if Fp == F else jnp.pad(b1, (0, Fp - F))).reshape(1, Fp)
    w2p = w2 if (Dp == D and Fp == F) else jnp.pad(w2, ((0, Fp - F), (0, Dp - D)))
    b2p = (b2 if Dp == D else jnp.pad(b2, (0, Dp - D))).reshape(1, Dp)

    def forward(x):
        return _ffn_call(x, w1p, b1p, w2p, b2p,
                         use_f_tiling=bool(use_f_tiling), tf=int(tf),
                         tm_target=int(tm_target),
                         vmem_limit=int(cfg["vmem_limit"]),
                         wbuf_depth=int(cfg["wbuf_depth"]),
                         two_tc=bool(cfg["two_tc"]),
                         pm_ok=bool(cfg["pm_ok"]))

    return forward


# ----------------------------------------------------------------------------
# Param init (PyTorch nn.Linear default: U(-1/sqrt(fan_in), 1/sqrt(fan_in)))
# ----------------------------------------------------------------------------
def init_params(key, dim, ffn_dim, dtype=jnp.float32):
    k1, k2, k3, k4 = jax.random.split(key, 4)
    bound1 = 1.0 / (dim ** 0.5)
    bound2 = 1.0 / (ffn_dim ** 0.5)
    w1 = jax.random.uniform(k1, (dim, ffn_dim), jnp.float32, -bound1, bound1).astype(dtype)
    b1 = jax.random.uniform(k2, (ffn_dim,), jnp.float32, -bound1, bound1).astype(dtype)
    w2 = jax.random.uniform(k3, (ffn_dim, dim), jnp.float32, -bound2, bound2).astype(dtype)
    b2 = jax.random.uniform(k4, (dim,), jnp.float32, -bound2, bound2).astype(dtype)
    return w1, b1, w2, b2


def _ref_ffn(x, w1, b1, w2, b2):
    xf = x.astype(jnp.float32)
    return (jnp.maximum(xf @ w1.astype(jnp.float32) + b1.astype(jnp.float32), 0.0)
            @ w2.astype(jnp.float32) + b2.astype(jnp.float32))


if __name__ == "__main__":
    key = jax.random.PRNGKey(0)
    kx, kp = jax.random.split(key)

    # --- case 1: small f32 shapes, resident-weight path ----------------------
    batch, seq, dim, ffn_dim = 2, 8, 32, 64
    x = jax.random.normal(kx, (batch, seq, dim), jnp.float32)
    w1, b1, w2, b2 = init_params(kp, dim, ffn_dim, jnp.float32)

    ffn = make_ffn(w1, b1, w2, b2)
    out = jax.block_until_ready(ffn(x))
    ref = _ref_ffn(x, w1, b1, w2, b2)
    assert out.shape == (batch, seq, dim)
    assert jnp.allclose(out, ref, atol=1e-5, rtol=1e-5)

    # --- case 2: bf16 params, forced F-tiled accumulator path (2 hidden-dim steps) ---
    dim2, ffn2 = 128, 256
    xb = jax.random.normal(kx, (batch, seq, dim2), jnp.float32).astype(jnp.bfloat16)
    w1b, b1b, w2b, b2b = init_params(kp, dim2, ffn2, jnp.bfloat16)

    ffn_b = make_ffn(w1b, b1b, w2b, b2b, force_f_tiled=True, tf=128)
    out_b = jax.block_until_ready(ffn_b(xb))
    ref_b = _ref_ffn(xb, w1b, b1b, w2b, b2b)
    assert out_b.shape == (batch, seq, dim2)
    assert jnp.allclose(out_b.astype(jnp.float32), ref_b, atol=1e-1, rtol=1e-1)

    print("KERNEL_OK")
</pallas_src>

<mosaic_0001>
module attributes {stable_mosaic.version = 11 : i64} {
  func.func @k(%arg0: i32, %arg1: memref<8x128xf32, #tpu.memory_space<vmem>>, %arg2: memref<8x128xf32, #tpu.memory_space<vmem>>) attributes {dimension_semantics = [#tpu.dimension_semantics<arbitrary>], iteration_bounds = array<i64: 1>, scalar_prefetch = 0 : i64, scratch_operands = 0 : i64, tpu.core_type = #tpu.core_type<tc>, window_params = [{pipeline_mode = #tpu.pipeline_mode<synchronous>, transform_indices = @transform_0, window_bounds = array<i64: 8, 128>}, {pipeline_mode = #tpu.pipeline_mode<synchronous>, transform_indices = @transform_1, window_bounds = array<i64: 8, 128>}]} {
    %c0 = arith.constant 0 : index
    %c0_0 = arith.constant 0 : index
    %0 = vector.load %arg1[%c0, %c0_0] : memref<8x128xf32, #tpu.memory_space<vmem>>, vector<8x128xf32>
    %c0_1 = arith.constant 0 : index
    %c0_2 = arith.constant 0 : index
    %1 = vector.load %arg2[%c0_1, %c0_2] : memref<8x128xf32, #tpu.memory_space<vmem>>, vector<8x128xf32>
    tpu.vector_store %arg2[%c0_1, %c0_2], %0 {strides = array<i32>} : memref<8x128xf32, #tpu.memory_space<vmem>>, vector<8x128xf32>,
    return
  }
  func.func @transform_0(%arg0: i32) -> (i32, i32) {
    %c0_i32 = arith.constant 0 : i32
    %c0_i32_0 = arith.constant 0 : i32
    %c0_i32_1 = arith.constant 0 : i32
    return %c0_i32, %c0_i32_0 : i32, i32
  }
  func.func @transform_1(%arg0: i32) -> (i32, i32) {
    %c0_i32 = arith.constant 0 : i32
    %c0_i32_0 = arith.constant 0 : i32
    %c0_i32_1 = arith.constant 0 : i32
    return %c0_i32, %c0_i32_0 : i32, i32
  }
}

module attributes {stable_mosaic.version = 11 : i64} {
  func.func @ffn_kernel_resident(%arg0: i32, %arg1: memref<16x128xf32, #tpu.memory_space<vmem>>, %arg2: memref<128x128xf32, #tpu.memory_space<vmem>>, %arg3: memref<1x128xf32, #tpu.memory_space<vmem>>, %arg4: memref<128x128xf32, #tpu.memory_space<vmem>>, %arg5: memref<1x128xf32, #tpu.memory_space<vmem>>, %arg6: memref<16x128xf32, #tpu.memory_space<vmem>>) attributes {dimension_semantics = [#tpu.dimension_semantics<parallel>], iteration_bounds = array<i64: 1>, scalar_prefetch = 0 : i64, scratch_operands = 0 : i64, tpu.core_type = #tpu.core_type<tc>, window_params = [{transform_indices = @transform_0, window_bounds = array<i64: 16, 128>}, {pipeline_mode = #tpu.pipeline_mode<synchronous>, transform_indices = @transform_1, window_bounds = array<i64: 128, 128>}, {pipeline_mode = #tpu.pipeline_mode<synchronous>, transform_indices = @transform_2, window_bounds = array<i64: 1, 128>}, {pipeline_mode = #tpu.pipeline_mode<synchronous>, transform_indices = @transform_3, window_bounds = array<i64: 128, 128>}, {pipeline_mode = #tpu.pipeline_mode<synchronous>, transform_indices = @transform_4, window_bounds = array<i64: 1, 128>}, {transform_indices = @transform_5, window_bounds = array<i64: 16, 128>}]} {
    %c0 = arith.constant 0 : index
    %c0_0 = arith.constant 0 : index
    %0 = vector.load %arg1[%c0, %c0_0] : memref<16x128xf32, #tpu.memory_space<vmem>>, vector<16x128xf32>
    %c0_1 = arith.constant 0 : index
    %c0_2 = arith.constant 0 : index
    %1 = vector.load %arg2[%c0_1, %c0_2] : memref<128x128xf32, #tpu.memory_space<vmem>>, vector<128x128xf32>
    %cst = arith.constant dense<0.000000e+00> : vector<16x128xf32>
    %2 = tpu.matmul %0, %1, %cst {dimension_numbers = #tpu.dot_dimension_numbers<[1], [0], [0], [1], [0, 0, 1, 1], [], []>} : vector<16x128xf32>, vector<128x128xf32>, vector<16x128xf32> -> vector<16x128xf32>
    %c0_3 = arith.constant 0 : index
    %c0_4 = arith.constant 0 : index
    %3 = vector.load %arg3[%c0_3, %c0_4] : memref<1x128xf32, #tpu.memory_space<vmem>>, vector<1x128xf32>
    %4 = vector.broadcast %3 : vector<1x128xf32> to vector<16x128xf32>
    %5 = arith.addf %2, %4 : vector<16x128xf32>
    %cst_5 = arith.constant 0.000000e+00 : f32
    %6 = vector.broadcast %cst_5 : f32 to vector<16x128xf32>
    %7 = arith.maximumf %5, %6 : vector<16x128xf32>
    %c0_6 = arith.constant 0 : index
    %c0_7 = arith.constant 0 : index
    %8 = vector.load %arg4[%c0_6, %c0_7] : memref<128x128xf32, #tpu.memory_space<vmem>>, vector<128x128xf32>
    %cst_8 = arith.constant dense<0.000000e+00> : vector<16x128xf32>
    %9 = tpu.matmul %7, %8, %cst_8 {dimension_numbers = #tpu.dot_dimension_numbers<[1], [0], [0], [1], [0, 0, 1, 1], [], []>} : vector<16x128xf32>, vector<128x128xf32>, vector<16x128xf32> -> vector<16x128xf32>
    %c0_9 = arith.constant 0 : index
    %c0_10 = arith.constant 0 : index
    %10 = vector.load %arg5[%c0_9, %c0_10] : memref<1x128xf32, #tpu.memory_space<vmem>>, vector<1x128xf32>
    %11 = vector.broadcast %10 : vector<1x128xf32> to vector<16x128xf32>
    %12 = arith.addf %9, %11 : vector<16x128xf32>
    %c0_11 = arith.constant 0 : index
    %c0_12 = arith.constant 0 : index
    %13 = vector.load %arg6[%c0_11, %c0_12] : memref<16x128xf32, #tpu.memory_space<vmem>>, vector<16x128xf32>
    tpu.vector_store %arg6[%c0_11, %c0_12], %12 {strides = array<i32>} : memref<16x128xf32, #tpu.memory_space<vmem>>, vector<16x128xf32>,
    return
  }
  func.func @transform_0(%arg0: i32) -> (i32, i32) {
    %c0_i32 = arith.constant 0 : i32
    %c0_i32_0 = arith.constant 0 : i32
    return %arg0, %c0_i32 : i32, i32
  }
  func.func @transform_1(%arg0: i32) -> (i32, i32) {
    %c0_i32 = arith.constant 0 : i32
    %c0_i32_0 = arith.constant 0 : i32
    %c0_i32_1 = arith.constant 0 : i32
    return %c0_i32, %c0_i32_0 : i32, i32
  }
  func.func @transform_2(%arg0: i32) -> (i32, i32) {
    %c0_i32 = arith.constant 0 : i32
    %c0_i32_0 = arith.constant 0 : i32
    %c0_i32_1 = arith.constant 0 : i32
    return %c0_i32, %c0_i32_0 : i32, i32
  }
  func.func @transform_3(%arg0: i32) -> (i32, i32) {
    %c0_i32 = arith.constant 0 : i32
    %c0_i32_0 = arith.constant 0 : i32
    %c0_i32_1 = arith.constant 0 : i32
    return %c0_i32, %c0_i32_0 : i32, i32
  }
  func.func @transform_4(%arg0: i32) -> (i32, i32) {
    %c0_i32 = arith.constant 0 : i32
    %c0_i32_0 = arith.constant 0 : i32
    %c0_i32_1 = arith.constant 0 : i32
    return %c0_i32, %c0_i32_0 : i32, i32
  }
  func.func @transform_5(%arg0: i32) -> (i32, i32) {
    %c0_i32 = arith.constant 0 : i32
    %c0_i32_0 = arith.constant 0 : i32
    return %arg0, %c0_i32 : i32, i32
  }
}

</mosaic_0001>

<llo_original>
// kernel: tpu_custom_call.1
$region0: #{tpu_custom_call.1}
  #allocation0 [shape = 'u32[]', space=smem, size = 0x4, offset = 0x4, fixed_abs, tag = 'smem constant byte address 0x4 - core index']
  #allocation1 [shape = 'u32[144,128]{1,0:T(1,128)}', space=vmem, size = 0x12000, scoped, tag = 'internal scratch']
  %s0 = inlined_call_operand.hbm [shape: f32[8,128], index: 0, kind: input, shape index: {}]
  %s1 = inlined_call_operand.hbm [shape: f32[8,128], index: 1, kind: output, shape index: {}]
  %s2 = sld [smem:[#allocation0]]
  $region18: #{tpu_custom_call.1} parent=0
    _
  %s4 = ssub.s32 1, %s2
  %s5 = scalar_select 0, %s4, %s2
  $region1: #{tpu_custom_call.1} parent=0
    #allocation2 [shape = 'u8[4096]{0}', space=vmem, size = 0x1000, scoped, tag = 'input window, operand 0, single buffered']
    #allocation3 [shape = 's32[1]{0}', space=sflag, size = 0x4, scoped, tag = 'scoped memory for tpu_custom_call.1']
    #allocation4 [shape = 's32[1]{0}', space=sflag, size = 0x4, scoped, tag = 'scoped memory for tpu_custom_call.1']
    #allocation5 [shape = 'u8[4096]{0}', space=vmem, size = 0x1000, scoped, tag = 'output window, operand 0, single buffered']
    %6 = vsyncpa [#allocation3], 0
    %7 = vsyncpa [#allocation4], 0
    // Predicated region
    $region2: #{tpu_custom_call.1} parent=1 // pred_check
      _
    $region3: #{tpu_custom_call.1} parent=1 // pred_check_branch
      %9 = sbr.rel (0) target = $region5
    $region4: #{tpu_custom_call.1} parent=1 // pred_region
      %s11 = ssub.s32 128, 128
      %12 = vsyncadd [#allocation3], %s11
      %s14 = sshll.u32 [#allocation2], 4
      %s15 = int_to_ptr.vmem [resolvable:$true] %s14
      %17 = dma.hbm_to_vmem [thread:$0]  %s0, 128, %s15, [#allocation3]
    $region5: #{tpu_custom_call.1} parent=1 // pred_fallthru
      _
    // Predicated region
    $region6: #{tpu_custom_call.1} parent=1 // pred_check
      _
    $region7: #{tpu_custom_call.1} parent=1 // pred_check_branch
      %19 = sbr.rel (0) target = $region9
    $region8: #{tpu_custom_call.1} parent=1 // pred_region
      %20 = dma.done [#allocation3], 128
    $region9: #{tpu_custom_call.1} parent=1 // pred_fallthru
      _
    %v21 = vld [vmem:[#allocation2] sm:$0xff]
    %22 = vst [vmem:[#allocation5] sm:$0xff] %v21
    // Predicated region
    $region10: #{tpu_custom_call.1} parent=1 // pred_check
      _
    $region11: #{tpu_custom_call.1} parent=1 // pred_check_branch
      %24 = sbr.rel (0) target = $region13
    $region12: #{tpu_custom_call.1} parent=1 // pred_region
      %s26 = ssub.s32 128, 128
      %27 = vsyncadd [#allocation4], %s26
      %s29 = sshll.u32 [#allocation5], 4
      %s30 = int_to_ptr.vmem [resolvable:$true] %s29
      %32 = dma.vmem_to_hbm [thread:$0]  %s30, 128, %s1, [#allocation4]
    $region13: #{tpu_custom_call.1} parent=1 // pred_fallthru
      _
    // Predicated region
    $region14: #{tpu_custom_call.1} parent=1 // pred_check
      _
    $region15: #{tpu_custom_call.1} parent=1 // pred_check_branch
      %34 = sbr.rel (0) target = $region17
    $region16: #{tpu_custom_call.1} parent=1 // pred_region
      %35 = dma.done [#allocation4], 128
    $region17: #{tpu_custom_call.1} parent=1 // pred_fallthru
      _
    %36 = vsyncpa [#allocation3], 1
    %37 = vsyncpa [#allocation4], 1

// kernel: _ffn_call.1
$region0: #{_ffn_call.1}
  #allocation0 [shape = 'u32[]', space=smem, size = 0x4, offset = 0x4, fixed_abs, tag = 'smem constant byte address 0x4 - core index']
  #allocation1 [shape = 'u32[144,128]{1,0:T(1,128)}', space=vmem, size = 0x12000, scoped, tag = 'internal scratch']
  %s0 = inlined_call_operand.hbm [shape: f32[16,128], index: 0, kind: input, shape index: {}]
  %s1 = inlined_call_operand.hbm [shape: f32[128,128], index: 1, kind: input, shape index: {}]
  %s2 = inlined_call_operand.hbm [shape: f32[1,128], index: 2, kind: input, shape index: {}]
  %s3 = inlined_call_operand.hbm [shape: f32[128,128], index: 3, kind: input, shape index: {}]
  %s4 = inlined_call_operand.hbm [shape: f32[1,128], index: 4, kind: input, shape index: {}]
  %s5 = inlined_call_operand.hbm [shape: f32[16,128], index: 5, kind: output, shape index: {}]
  %s6 = sld [smem:[#allocation0]]
  $region50: #{_ffn_call.1} parent=0
    _
  %s8 = ssub.s32 1, %s6
  %s9 = scalar_select 0, %s8, %s6
  $region1: #{_ffn_call.1} parent=0
    #allocation2 [shape = 'u8[8192]{0}', space=vmem, size = 0x2000, scoped, tag = 'input window, operand 0, single buffered']
    #allocation3 [shape = 's32[1]{0}', space=sflag, size = 0x4, scoped, tag = 'scoped memory for _ffn_call.1']
    #allocation4 [shape = 's32[1]{0}', space=sflag, size = 0x4, scoped, tag = 'scoped memory for _ffn_call.1']
    #allocation5 [shape = 'u8[65536]{0}', space=vmem, size = 0x10000, scoped, tag = 'input window, operand 1, single buffered']
    #allocation6 [shape = 's32[1]{0}', space=sflag, size = 0x4, scoped, tag = 'scoped memory for _ffn_call.1']
    #allocation7 [shape = 'u8[512]{0}', space=vmem, size = 0x400, scoped, tag = 'input window, operand 2, single buffered']
    #allocation8 [shape = 'u8[65536]{0}', space=vmem, size = 0x10000, scoped, tag = 'input window, operand 3, single buffered']
    #allocation9 [shape = 's32[1]{0}', space=sflag, size = 0x4, scoped, tag = 'scoped memory for _ffn_call.1']
    #allocation10 [shape = 'u8[512]{0}', space=vmem, size = 0x400, scoped, tag = 'input window, operand 4, single buffered']
    #allocation11 [shape = 'u8[8192]{0}', space=vmem, size = 0x2000, scoped, tag = 'output window, operand 0, single buffered']
    %10 = vsyncpa [#allocation3], 0
    %11 = vsyncpa [#allocation6], 0
    %12 = vsyncpa [#allocation9], 0
    %13 = vsyncpa [#allocation4], 0
    // Predicated region
    $region2: #{_ffn_call.1} parent=1 // pred_check
      _
    $region3: #{_ffn_call.1} parent=1 // pred_check_branch
      %15 = sbr.rel (0) target = $region5
    $region4: #{_ffn_call.1} parent=1 // pred_region
      %s17 = ssub.s32 256, 256
      %18 = vsyncadd [#allocation3], %s17
      %s19 = sshll.u32 [#allocation2], 4
      %s20 = int_to_ptr.vmem [resolvable:$true] %s19
      %25 = dma.hbm_to_vmem [thread:$0]  %s0, 256, %s20, [#allocation3], 128, 128, 8
    $region5: #{_ffn_call.1} parent=1 // pred_fallthru
      _
    // Predicated region
    $region6: #{_ffn_call.1} parent=1 // pred_check
      _
    $region7: #{_ffn_call.1} parent=1 // pred_check_branch
      %27 = sbr.rel (0) target = $region9
    $region8: #{_ffn_call.1} parent=1 // pred_region
      %s29 = ssub.s32 2048, 2048
      %30 = vsyncadd [#allocation6], %s29
      %s31 = sshll.u32 [#allocation5], 4
      %s32 = int_to_ptr.vmem [resolvable:$true] %s31
      %37 = dma.hbm_to_vmem [thread:$0]  %s1, 2048, %s32, [#allocation6], 128, 128, 8
    $region9: #{_ffn_call.1} parent=1 // pred_fallthru
      _
    // Predicated region
    $region10: #{_ffn_call.1} parent=1 // pred_check
      _
    $region11: #{_ffn_call.1} parent=1 // pred_check_branch
      %39 = sbr.rel (0) target = $region13
    $region12: #{_ffn_call.1} parent=1 // pred_region
      %s41 = ssub.s32 16, 16
      %42 = vsyncadd [#allocation6], %s41
      %s44 = sshll.u32 [#allocation7], 4
      %s45 = int_to_ptr.vmem [resolvable:$true] %s44
      %47 = dma.hbm_to_vmem [thread:$0]  %s2, 16, %s45, [#allocation6]
    $region13: #{_ffn_call.1} parent=1 // pred_fallthru
      _
    // Predicated region
    $region14: #{_ffn_call.1} parent=1 // pred_check
      _
    $region15: #{_ffn_call.1} parent=1 // pred_check_branch
      %49 = sbr.rel (0) target = $region17
    $region16: #{_ffn_call.1} parent=1 // pred_region
      %s51 = ssub.s32 2048, 2048
      %52 = vsyncadd [#allocation9], %s51
      %s53 = sshll.u32 [#allocation8], 4
      %s54 = int_to_ptr.vmem [resolvable:$true] %s53
      %59 = dma.hbm_to_vmem [thread:$0]  %s3, 2048, %s54, [#allocation9], 128, 128, 8
    $region17: #{_ffn_call.1} parent=1 // pred_fallthru
      _
    // Predicated region
    $region18: #{_ffn_call.1} parent=1 // pred_check
      _
    $region19: #{_ffn_call.1} parent=1 // pred_check_branch
      %61 = sbr.rel (0) target = $region21
    $region20: #{_ffn_call.1} parent=1 // pred_region
      %s63 = ssub.s32 16, 16
      %64 = vsyncadd [#allocation9], %s63
      %s66 = sshll.u32 [#allocation10], 4
      %s67 = int_to_ptr.vmem [resolvable:$true] %s66
      %69 = dma.hbm_to_vmem [thread:$0]  %s4, 16, %s67, [#allocation9]
    $region21: #{_ffn_call.1} parent=1 // pred_fallthru
      _
    // Predicated region
    $region22: #{_ffn_call.1} parent=1 // pred_check
      _
    $region23: #{_ffn_call.1} parent=1 // pred_check_branch
      %71 = sbr.rel (0) target = $region25
    $region24: #{_ffn_call.1} parent=1 // pred_region
      %72 = dma.done [#allocation3], 256
    $region25: #{_ffn_call.1} parent=1 // pred_fallthru
      _
    // Predicated region
    $region26: #{_ffn_call.1} parent=1 // pred_check
      _
    $region27: #{_ffn_call.1} parent=1 // pred_check_branch
      %74 = sbr.rel (0) target = $region29
    $region28: #{_ffn_call.1} parent=1 // pred_region
      %75 = dma.done [#allocation6], 2048
    $region29: #{_ffn_call.1} parent=1 // pred_fallthru
      _
    // Predicated region
    $region30: #{_ffn_call.1} parent=1 // pred_check
      _
    $region31: #{_ffn_call.1} parent=1 // pred_check_branch
      %77 = sbr.rel (0) target = $region33
    $region32: #{_ffn_call.1} parent=1 // pred_region
      %78 = dma.done [#allocation6], 16
    $region33: #{_ffn_call.1} parent=1 // pred_fallthru
      _
    // Predicated region
    $region34: #{_ffn_call.1} parent=1 // pred_check
      _
    $region35: #{_ffn_call.1} parent=1 // pred_check_branch
      %80 = sbr.rel (0) target = $region37
    $region36: #{_ffn_call.1} parent=1 // pred_region
      %81 = dma.done [#allocation9], 2048
    $region37: #{_ffn_call.1} parent=1 // pred_fallthru
      _
    // Predicated region
    $region38: #{_ffn_call.1} parent=1 // pred_check
      _
    $region39: #{_ffn_call.1} parent=1 // pred_check_branch
      %83 = sbr.rel (0) target = $region41
    $region40: #{_ffn_call.1} parent=1 // pred_region
      %84 = dma.done [#allocation9], 16
    $region41: #{_ffn_call.1} parent=1 // pred_fallthru
      _
    %v85 = vld [vmem:[#allocation2] sm:$0xff]
    %v86 = vld [vmem:[#allocation2 + $0x8] sm:$0xff]
    %v87 = vld [vmem:[#allocation5] sm:$0xff]
    %v88 = vld [vmem:[#allocation5 + $0x8] sm:$0xff]
    %v89 = vld [vmem:[#allocation5 + $0x10] sm:$0xff]
    %v90 = vld [vmem:[#allocation5 + $0x18] sm:$0xff]
    %v91 = vld [vmem:[#allocation5 + $0x20] sm:$0xff]
    %v92 = vld [vmem:[#allocation5 + $0x28] sm:$0xff]
    %v93 = vld [vmem:[#allocation5 + $0x30] sm:$0xff]
    %v94 = vld [vmem:[#allocation5 + $0x38] sm:$0xff]
    %v95 = vld [vmem:[#allocation5 + $0x40] sm:$0xff]
    %v96 = vld [vmem:[#allocation5 + $0x48] sm:$0xff]
    %v97 = vld [vmem:[#allocation5 + $0x50] sm:$0xff]
    %v98 = vld [vmem:[#allocation5 + $0x58] sm:$0xff]
    %v99 = vld [vmem:[#allocation5 + $0x60] sm:$0xff]
    %v100 = vld [vmem:[#allocation5 + $0x68] sm:$0xff]
    %v101 = vld [vmem:[#allocation5 + $0x70] sm:$0xff]
    %v102 = vld [vmem:[#allocation5 + $0x78] sm:$0xff]
    %v103 = vld [vmem:[#allocation7] sm:$0x1]
    %v105 = vlaneseq
    %v106 = vshrl.u32 %v105, 7
    %v107 = vsub.s32 0, %v106
    %v108 = vrot.slane %v103, %v107
    %110 = vmatprep.subr.mxu0 0.0
    %111 = vmatpush1.msra.mxu0 %v87
    %112 = vmatprep.subr.mxu0 0.0
    %113 = vmatpush1.msra.mxu0 %v88
    %114 = vmatprep.subr.mxu0 0.0
    %115 = vmatpush1.msra.mxu0 %v89
    %116 = vmatprep.subr.mxu0 0.0
    %117 = vmatpush1.msra.mxu0 %v90
    %118 = vmatprep.subr.mxu0 0.0
    %119 = vmatpush1.msra.mxu0 %v91
    %120 = vmatprep.subr.mxu0 0.0
    %121 = vmatpush1.msra.mxu0 %v92
    %122 = vmatprep.subr.mxu0 0.0
    %123 = vmatpush1.msra.mxu0 %v93
    %124 = vmatprep.subr.mxu0 0.0
    %125 = vmatpush1.msra.mxu0 %v94
    %126 = vmatprep.subr.mxu0 0.0
    %127 = vmatpush1.msra.mxu0 %v95
    %128 = vmatprep.subr.mxu0 0.0
    %129 = vmatpush1.msra.mxu0 %v96
    %130 = vmatprep.subr.mxu0 0.0
    %131 = vmatpush1.msra.mxu0 %v97
    %132 = vmatprep.subr.mxu0 0.0
    %133 = vmatpush1.msra.mxu0 %v98
    %134 = vmatprep.subr.mxu0 0.0
    %135 = vmatpush1.msra.mxu0 %v99
    %136 = vmatprep.subr.mxu0 0.0
    %137 = vmatpush1.msra.mxu0 %v100
    %138 = vmatprep.subr.mxu0 0.0
    %139 = vmatpush1.msra.mxu0 %v101
    %140 = vmatprep.subr.mxu0 0.0
    %141 = vmatpush1.msra.mxu0 %v102
    %142 = vmatprep.subr.mxu0 0.0
    %143 = vmatpush1.msra.mxu0 0.0
    %144 = vmatprep.subr.mxu0 0.0
    %145 = vmatpush1.msra.mxu0 0.0
    %146 = vmatprep.subr.mxu0 0.0
    %147 = vmatpush1.msra.mxu0 0.0
    %148 = vmatprep.subr.mxu0 0.0
    %149 = vmatpush1.msra.mxu0 0.0
    %150 = vmatprep.subr.mxu0 0.0
    %151 = vmatpush1.msra.mxu0 0.0
    %152 = vmatprep.subr.mxu0 0.0
    %153 = vmatpush1.msra.mxu0 0.0
    %154 = vmatprep.subr.mxu0 0.0
    %155 = vmatpush1.msra.mxu0 0.0
    %156 = vmatprep.subr.mxu0 0.0
    %157 = vmatpush1.msra.mxu0 0.0
    %158 = vmatprep.subr.mxu0 0.0
    %159 = vmatpush1.msra.mxu0 0.0
    %160 = vmatprep.subr.mxu0 0.0
    %161 = vmatpush1.msra.mxu0 0.0
    %162 = vmatprep.subr.mxu0 0.0
    %163 = vmatpush1.msra.mxu0 0.0
    %164 = vmatprep.subr.mxu0 0.0
    %165 = vmatpush1.msra.mxu0 0.0
    %166 = vmatprep.subr.mxu0 0.0
    %167 = vmatpush1.msra.mxu0 0.0
    %168 = vmatprep.subr.mxu0 0.0
    %169 = vmatpush1.msra.mxu0 0.0
    %170 = vmatprep.subr.mxu0 0.0
    %171 = vmatpush1.msra.mxu0 0.0
    %172 = vmatprep.subr.mxu0 0.0
    %173 = vmatpush1.msra.mxu0 0.0
    %174 = vmatprep.mubr.f32.mxu0 0.0
    %175 = vmatmul.mubr.f32.gmra.mrb[0].mxu0 %v85
    %v176 = vpop.f32.mrb[0].mxu0
    %v177 = vadd.f32 %v108, %v176
    %v178 = vpop.f32.mrb[0].mxu0
    %179 = vmatprep.mubr.f32.mxu0 0.0
    %180 = vmatmul.mubr.f32.gmra.mrb[0].mxu0 %v86
    %v181 = vpop.f32.mrb[0].mxu0
    %v182 = vadd.f32 %v108, %v181
    %v183 = vpop.f32.mrb[0].mxu0
    %184 = vdwg.mxu0
    %v185 = vmax.f32 %v177, 0.0
    %v186 = vmax.f32 %v182, 0.0
    %v187 = vld [vmem:[#allocation8] sm:$0xff]
    %v188 = vld [vmem:[#allocation8 + $0x8] sm:$0xff]
    %v189 = vld [vmem:[#allocation8 + $0x10] sm:$0xff]
    %v190 = vld [vmem:[#allocation8 + $0x18] sm:$0xff]
    %v191 = vld [vmem:[#allocation8 + $0x20] sm:$0xff]
    %v192 = vld [vmem:[#allocation8 + $0x28] sm:$0xff]
    %v193 = vld [vmem:[#allocation8 + $0x30] sm:$0xff]
    %v194 = vld [vmem:[#allocation8 + $0x38] sm:$0xff]
    %v195 = vld [vmem:[#allocation8 + $0x40] sm:$0xff]
    %v196 = vld [vmem:[#allocation8 + $0x48] sm:$0xff]
    %v197 = vld [vmem:[#allocation8 + $0x50] sm:$0xff]
    %v198 = vld [vmem:[#allocation8 + $0x58] sm:$0xff]
    %v199 = vld [vmem:[#allocation8 + $0x60] sm:$0xff]
    %v200 = vld [vmem:[#allocation8 + $0x68] sm:$0xff]
    %v201 = vld [vmem:[#allocation8 + $0x70] sm:$0xff]
    %v202 = vld [vmem:[#allocation8 + $0x78] sm:$0xff]
    %v203 = vld [vmem:[#allocation10] sm:$0x1]
    %v205 = vlaneseq
    %v206 = vshrl.u32 %v205, 7
    %v207 = vsub.s32 0, %v206
    %v208 = vrot.slane %v203, %v207
    %210 = vmatprep.subr.mxu0 0.0
    %211 = vmatpush1.msra.mxu0 %v187
    %212 = vmatprep.subr.mxu0 0.0
    %213 = vmatpush1.msra.mxu0 %v188
    %214 = vmatprep.subr.mxu0 0.0
    %215 = vmatpush1.msra.mxu0 %v189
    %216 = vmatprep.subr.mxu0 0.0
    %217 = vmatpush1.msra.mxu0 %v190
    %218 = vmatprep.subr.mxu0 0.0
    %219 = vmatpush1.msra.mxu0 %v191
    %220 = vmatprep.subr.mxu0 0.0
    %221 = vmatpush1.msra.mxu0 %v192
    %222 = vmatprep.subr.mxu0 0.0
    %223 = vmatpush1.msra.mxu0 %v193
    %224 = vmatprep.subr.mxu0 0.0
    %225 = vmatpush1.msra.mxu0 %v194
    %226 = vmatprep.subr.mxu0 0.0
    %227 = vmatpush1.msra.mxu0 %v195
    %228 = vmatprep.subr.mxu0 0.0
    %229 = vmatpush1.msra.mxu0 %v196
    %230 = vmatprep.subr.mxu0 0.0
    %231 = vmatpush1.msra.mxu0 %v197
    %232 = vmatprep.subr.mxu0 0.0
    %233 = vmatpush1.msra.mxu0 %v198
    %234 = vmatprep.subr.mxu0 0.0
    %235 = vmatpush1.msra.mxu0 %v199
    %236 = vmatprep.subr.mxu0 0.0
    %237 = vmatpush1.msra.mxu0 %v200
    %238 = vmatprep.subr.mxu0 0.0
    %239 = vmatpush1.msra.mxu0 %v201
    %240 = vmatprep.subr.mxu0 0.0
    %241 = vmatpush1.msra.mxu0 %v202
    %242 = vmatprep.subr.mxu0 0.0
    %243 = vmatpush1.msra.mxu0 0.0
    %244 = vmatprep.subr.mxu0 0.0
    %245 = vmatpush1.msra.mxu0 0.0
    %246 = vmatprep.subr.mxu0 0.0
    %247 = vmatpush1.msra.mxu0 0.0
    %248 = vmatprep.subr.mxu0 0.0
    %249 = vmatpush1.msra.mxu0 0.0
    %250 = vmatprep.subr.mxu0 0.0
    %251 = vmatpush1.msra.mxu0 0.0
    %252 = vmatprep.subr.mxu0 0.0
    %253 = vmatpush1.msra.mxu0 0.0
    %254 = vmatprep.subr.mxu0 0.0
    %255 = vmatpush1.msra.mxu0 0.0
    %256 = vmatprep.subr.mxu0 0.0
    %257 = vmatpush1.msra.mxu0 0.0
    %258 = vmatprep.subr.mxu0 0.0
    %259 = vmatpush1.msra.mxu0 0.0
    %260 = vmatprep.subr.mxu0 0.0
    %261 = vmatpush1.msra.mxu0 0.0
    %262 = vmatprep.subr.mxu0 0.0
    %263 = vmatpush1.msra.mxu0 0.0
    %264 = vmatprep.subr.mxu0 0.0
    %265 = vmatpush1.msra.mxu0 0.0
    %266 = vmatprep.subr.mxu0 0.0
    %267 = vmatpush1.msra.mxu0 0.0
    %268 = vmatprep.subr.mxu0 0.0
    %269 = vmatpush1.msra.mxu0 0.0
    %270 = vmatprep.subr.mxu0 0.0
    %271 = vmatpush1.msra.mxu0 0.0
    %272 = vmatprep.subr.mxu0 0.0
    %273 = vmatpush1.msra.mxu0 0.0
    %274 = vmatprep.mubr.f32.mxu0 0.0
    %275 = vmatmul.mubr.f32.gmra.mrb[0].mxu0 %v185
    %v276 = vpop.f32.mrb[0].mxu0
    %v277 = vadd.f32 %v208, %v276
    %v278 = vpop.f32.mrb[0].mxu0
    %279 = vmatprep.mubr.f32.mxu0 0.0
    %280 = vmatmul.mubr.f32.gmra.mrb[0].mxu0 %v186
    %v281 = vpop.f32.mrb[0].mxu0
    %v282 = vadd.f32 %v208, %v281
    %v283 = vpop.f32.mrb[0].mxu0
    %284 = vdwg.mxu0
    %285 = vst [vmem:[#allocation11] sm:$0xff] %v277
    %286 = vst [vmem:[#allocation11 + $0x8] sm:$0xff] %v282
    // Predicated region
    $region42: #{_ffn_call.1} parent=1 // pred_check
      _
    $region43: #{_ffn_call.1} parent=1 // pred_check_branch
      %288 = sbr.rel (0) target = $region45
    $region44: #{_ffn_call.1} parent=1 // pred_region
      %s290 = ssub.s32 256, 256
      %291 = vsyncadd [#allocation4], %s290
      %s292 = sshll.u32 [#allocation11], 4
      %s293 = int_to_ptr.vmem [resolvable:$true] %s292
      %298 = dma.vmem_to_hbm [thread:$0]  %s293, 256, %s5, [#allocation4], 128, 128, 8
    $region45: #{_ffn_call.1} parent=1 // pred_fallthru
      _
    // Predicated region
    $region46: #{_ffn_call.1} parent=1 // pred_check
      _
    $region47: #{_ffn_call.1} parent=1 // pred_check_branch
      %300 = sbr.rel (0) target = $region49
    $region48: #{_ffn_call.1} parent=1 // pred_region
      %301 = dma.done [#allocation4], 256
    $region49: #{_ffn_call.1} parent=1 // pred_fallthru
      _
    %302 = vsyncpa [#allocation3], 1
    %303 = vsyncpa [#allocation6], 1
    %304 = vsyncpa [#allocation9], 1
    %305 = vsyncpa [#allocation4], 1

</llo_original>
